<compile_context>
chip_gen: v7x
topology: tpu7x:2x2x1
jax: 0.10.0
libtpu: 0.0.40
codegen_flags: <defaults>
</compile_context>

<pallas_src>
import jax
import jax.numpy as jnp
from jax.experimental import pallas as pl
from jax.experimental.pallas import tpu as pltpu


def _cascading_heads_kernel(q_ref, k_ref, v_ref,
                            out_ref, scores_ref, post_ref,
                            carry_ref):
    """Grid = (B, H, num_q_tiles); H sequential (cascade), q-tiles innermost.

    Block views: q/out: [TQ, D], k/v: [N, D], scores/post: [TQ, N].
    carry_ref (VMEM scratch): [N, D] f32, previous-head output for every query
    row of the current batch element (sliced per query tile).
    """
    h = pl.program_id(1)
    i = pl.program_id(2)
    tq, d = q_ref.shape
    row0 = pl.multiple_of(i * tq, tq)

    # First head of the cascade for this query tile: zero its carry slice.
    @pl.when(h == 0)
    def _():
        carry_ref[pl.ds(row0, tq), :] = jnp.zeros((tq, d), jnp.float32)

    scale = d ** (-0.5)

    # Cascade add in f32; fold 1/sqrt(D) into q (TQ*D multiplies, not TQ*N).
    q_f32 = (q_ref[...].astype(jnp.float32)
             + carry_ref[pl.ds(row0, tq), :]) * scale
    # Feed the MXU in the input dtype (bf16 stays native); accumulate in f32.
    q_mm = q_f32.astype(q_ref.dtype)

    # dots = ((q + prev_out) * scale) @ k^T      [TQ, N]   (MXU)
    dots = jnp.einsum('id,jd->ij', q_mm, k_ref[...],
                      preferred_element_type=jnp.float32)

    # qk_similarities == pre_softmax_attn here (no mask/bias/causal): emit once,
    # the wrapper returns the same array twice (no second HBM write).
    scores_ref[...] = dots.astype(scores_ref.dtype)

    # Softmax in float32 (matches partial(F.softmax, dtype=torch.float32)).
    m = jnp.max(dots, axis=-1, keepdims=True)
    e = jnp.exp(dots - m)
    denom = jnp.sum(e, axis=-1, keepdims=True)
    # One reciprocal per row + a broadcast multiply instead of a [TQ, N] divide.
    # approx=False keeps exact f32-softmax parity; approx=True (EUP, free slot)
    # is available if bit-level parity with the reference is not required.
    attn = e * pl.reciprocal(denom, approx=False)

    post_ref[...] = attn.astype(post_ref.dtype)

    # out = attn @ v                             [TQ, D]   (MXU, f32 accumulate)
    out = jnp.einsum('ij,jd->id', attn.astype(v_ref.dtype), v_ref[...],
                     preferred_element_type=jnp.float32)

    # Carry to the next head; skip the pointless store on the last head.
    @pl.when(h < pl.num_programs(1) - 1)
    def _():
        carry_ref[pl.ds(row0, tq), :] = out

    # Note: for D < 128 this is a masked (partial-lane) store, but it is a small
    # fraction of total HBM traffic vs. the [TQ, N] attention maps -> accepted.
    out_ref[...] = out.astype(out_ref.dtype)


def cascading_heads(q, k, v, *, q_tile=256, intermediates_dtype=None,
                    vmem_limit_bytes=None):
    """q, k, v: [B, H, N, D].

    Returns (out [B,H,N,D], qk_similarities, pre_softmax_attn, post_softmax_attn
    each [B,H,N,N]).  qk_similarities and pre_softmax_attn are the same array
    (they are identical when mask/attn_bias/causal are all None).

    q_tile: query rows per grid step (cascade is row-wise so tiling is legal).
    intermediates_dtype: dtype for the attention-map outputs (default f32 to
      match PyTorch; pass jnp.bfloat16 to halve the dominant HBM writeback).
    vmem_limit_bytes: optional override of the scoped VMEM limit (useful on
      v5e, whose default scoped limit is 16 MiB).
    """
    B, H, N, D = q.shape
    assert k.shape == (B, H, N, D) and v.shape == (B, H, N, D)

    attn_dtype = (jnp.float32 if intermediates_dtype is None
                  else jnp.dtype(intermediates_dtype))

    # Query tiling: tile must divide N and be sublane-aligned (multiple of 8),
    # otherwise fall back to full rows (which always satisfies the block rule).
    tq = min(q_tile, N)
    if N % tq != 0 or (tq != N and tq % 8 != 0):
        tq = N
    n_q_tiles = N // tq

    # K/V block index depends only on (b, h): with the q-tile axis innermost,
    # the Pallas pipeline skips the K/V DMA between consecutive q-tile steps.
    q_spec = pl.BlockSpec((None, None, tq, D), lambda b, h, i: (b, h, i, 0))
    kv_spec = pl.BlockSpec((None, None, N, D), lambda b, h, i: (b, h, 0, 0))
    out_spec = pl.BlockSpec((None, None, tq, D), lambda b, h, i: (b, h, i, 0))
    attn_spec = pl.BlockSpec((None, None, tq, N), lambda b, h, i: (b, h, i, 0))

    out, scores, post = pl.pallas_call(
        _cascading_heads_kernel,
        out_shape=(
            jax.ShapeDtypeStruct((B, H, N, D), q.dtype),     # out
            jax.ShapeDtypeStruct((B, H, N, N), attn_dtype),  # qk_sim == pre_softmax
            jax.ShapeDtypeStruct((B, H, N, N), attn_dtype),  # post_softmax_attn
        ),
        grid_spec=pltpu.PrefetchScalarGridSpec(
            num_scalar_prefetch=0,
            grid=(B, H, n_q_tiles),
            in_specs=[q_spec, kv_spec, kv_spec],
            out_specs=[out_spec, attn_spec, attn_spec],
            # Cascade carry: prev-head out for every query row (f32).
            scratch_shapes=[pltpu.VMEM((N, D), jnp.float32)],
        ),
        compiler_params=pltpu.CompilerParams(
            # Batch is fully independent -> parallel (megacore on v7x).
            # Head axis carries the cascade; q-tile axis kept arbitrary so the
            # carry-through-scratch ordering is guaranteed.
            dimension_semantics=("parallel", "arbitrary", "arbitrary"),
            vmem_limit_bytes=vmem_limit_bytes,
        ),
    )(q, k, v)

    # qk_similarities and pre_softmax_attn are identical in this configuration:
    # return the same buffer twice instead of writing it to HBM twice.
    return out, scores, scores, post


def _reference(q, k, v):
    """Pure-JAX reference mirroring the PyTorch CascadingHeads(Attend()) forward."""
    B, H, N, D = q.shape
    scale = D ** (-0.5)
    hi = jax.lax.Precision.HIGHEST
    prev = jnp.zeros((B, N, D), jnp.float32)
    outs, qks, posts = [], [], []
    for h in range(H):
        qh = q[:, h].astype(jnp.float32) + prev
        dots = jnp.einsum('bid,bjd->bij', qh, k[:, h].astype(jnp.float32),
                          precision=hi) * scale
        attn = jax.nn.softmax(dots, axis=-1)
        o = jnp.einsum('bij,bjd->bid', attn, v[:, h].astype(jnp.float32),
                       precision=hi)
        prev = o
        outs.append(o)
        qks.append(dots)
        posts.append(attn)
    stack = lambda xs: jnp.stack(xs, axis=1)
    qk = stack(qks)
    return stack(outs), qk, qk, stack(posts)


if __name__ == "__main__":
    def _check(B, H, N, D, q_tile):
        key = jax.random.PRNGKey(0)
        kq, kk, kv = jax.random.split(key, 3)
        q = jax.random.normal(kq, (B, H, N, D), dtype=jnp.float32)
        k = jax.random.normal(kk, (B, H, N, D), dtype=jnp.float32)
        v = jax.random.normal(kv, (B, H, N, D), dtype=jnp.float32)

        out, qk_sim, pre_sm, post_sm = jax.block_until_ready(
            cascading_heads(q, k, v, q_tile=q_tile))

        ref_out, ref_qk, ref_pre, ref_post = _reference(q, k, v)
        assert jnp.allclose(out, ref_out, atol=1e-4, rtol=1e-4)
        assert jnp.allclose(qk_sim, ref_qk, atol=1e-4, rtol=1e-4)
        assert jnp.allclose(pre_sm, ref_pre, atol=1e-4, rtol=1e-4)
        assert jnp.allclose(post_sm, ref_post, atol=1e-4, rtol=1e-4)

    # Small shape matching the module's [B, H, N, D] layout (single q-tile path).
    _check(B=2, H=4, N=8, D=32, q_tile=256)
    # Exercise the tiled-query path (2 query tiles cascading over 3 heads).
    _check(B=1, H=3, N=256, D=64, q_tile=128)

    print("KERNEL_OK")
</pallas_src>

<mosaic_0001>
module attributes {stable_mosaic.version = 11 : i64} {
  func.func @_cascading_heads_kernel(%arg0: i32, %arg1: i32, %arg2: i32, %arg3: memref<1x1x8x32xf32, #tpu.memory_space<vmem>>, %arg4: memref<1x1x8x32xf32, #tpu.memory_space<vmem>>, %arg5: memref<1x1x8x32xf32, #tpu.memory_space<vmem>>, %arg6: memref<1x1x8x32xf32, #tpu.memory_space<vmem>>, %arg7: memref<1x1x8x8xf32, #tpu.memory_space<vmem>>, %arg8: memref<1x1x8x8xf32, #tpu.memory_space<vmem>>, %arg9: memref<8x32xf32, #tpu.memory_space<vmem>>) attributes {dimension_semantics = [#tpu.dimension_semantics<parallel>, #tpu.dimension_semantics<arbitrary>, #tpu.dimension_semantics<arbitrary>], iteration_bounds = array<i64: 2, 4, 1>, scalar_prefetch = 0 : i64, scratch_operands = 1 : i64, tpu.core_type = #tpu.core_type<tc>, window_params = [{transform_indices = @transform_0, window_bounds = array<i64: 1, 1, 8, 32>}, {transform_indices = @transform_1, window_bounds = array<i64: 1, 1, 8, 32>}, {transform_indices = @transform_2, window_bounds = array<i64: 1, 1, 8, 32>}, {transform_indices = @transform_3, window_bounds = array<i64: 1, 1, 8, 32>}, {transform_indices = @transform_4, window_bounds = array<i64: 1, 1, 8, 8>}, {transform_indices = @transform_5, window_bounds = array<i64: 1, 1, 8, 8>}]} {
    %c8_i32 = arith.constant 8 : i32
    %0 = arith.muli %arg2, %c8_i32 : i32
    %1 = tpu.assume_multiple %0, 8 : i32
    %c0_i32 = arith.constant 0 : i32
    %2 = arith.cmpi eq, %arg1, %c0_i32 : i32
    %3 = arith.extui %2 : i1 to i32
    %c0_i32_0 = arith.constant 0 : i32
    %4 = arith.cmpi ne, %3, %c0_i32_0 : i32
    scf.if %4 {
      %cst_30 = arith.constant 0.000000e+00 : f32
      %40 = vector.broadcast %cst_30 : f32 to vector<8x32xf32>
      %41 = arith.index_cast %1 : i32 to index
      %c0_31 = arith.constant 0 : index
      %42 = vector.load %arg9[%41, %c0_31] : memref<8x32xf32, #tpu.memory_space<vmem>>, vector<8x32xf32>
      tpu.vector_store %arg9[%41, %c0_31], %40 {strides = array<i32>} : memref<8x32xf32, #tpu.memory_space<vmem>>, vector<8x32xf32>,
    } else {
    }
    %c0 = arith.constant 0 : index
    %c0_1 = arith.constant 0 : index
    %c0_2 = arith.constant 0 : index
    %c0_3 = arith.constant 0 : index
    %5 = vector.load %arg3[%c0, %c0_1, %c0_2, %c0_3] : memref<1x1x8x32xf32, #tpu.memory_space<vmem>>, vector<1x1x8x32xf32>
    %6 = vector.shape_cast %5 : vector<1x1x8x32xf32> to vector<8x32xf32>
    %7 = arith.index_cast %1 : i32 to index
    %c0_4 = arith.constant 0 : index
    %8 = vector.load %arg9[%7, %c0_4] : memref<8x32xf32, #tpu.memory_space<vmem>>, vector<8x32xf32>
    %9 = arith.addf %6, %8 : vector<8x32xf32>
    %cst = arith.constant 0.176776692 : f32
    %10 = vector.broadcast %cst : f32 to vector<8x32xf32>
    %11 = arith.mulf %9, %10 : vector<8x32xf32>
    %c0_5 = arith.constant 0 : index
    %c0_6 = arith.constant 0 : index
    %c0_7 = arith.constant 0 : index
    %c0_8 = arith.constant 0 : index
    %12 = vector.load %arg4[%c0_5, %c0_6, %c0_7, %c0_8] : memref<1x1x8x32xf32, #tpu.memory_space<vmem>>, vector<1x1x8x32xf32>
    %13 = vector.shape_cast %12 : vector<1x1x8x32xf32> to vector<8x32xf32>
    "tpu.trace_start"() <{level = 10 : i32, message = "id,jd->ij"}> : () -> ()
    %cst_9 = arith.constant dense<0.000000e+00> : vector<8x8xf32>
    %14 = tpu.matmul %11, %13, %cst_9 {dimension_numbers = #tpu.dot_dimension_numbers<[1], [1], [0], [0], [0, 0, 1, 0], [], []>} : vector<8x32xf32>, vector<8x32xf32>, vector<8x8xf32> -> vector<8x8xf32>
    "tpu.trace_stop"() : () -> ()
    %c0_10 = arith.constant 0 : index
    %c0_11 = arith.constant 0 : index
    %c0_12 = arith.constant 0 : index
    %c0_13 = arith.constant 0 : index
    %15 = vector.load %arg7[%c0_10, %c0_11, %c0_12, %c0_13] : memref<1x1x8x8xf32, #tpu.memory_space<vmem>>, vector<1x1x8x8xf32>
    %16 = vector.shape_cast %15 : vector<1x1x8x8xf32> to vector<8x8xf32>
    %17 = vector.shape_cast %14 : vector<8x8xf32> to vector<1x1x8x8xf32>
    tpu.vector_store %arg7[%c0_10, %c0_11, %c0_12, %c0_13], %17 {strides = array<i32>} : memref<1x1x8x8xf32, #tpu.memory_space<vmem>>, vector<1x1x8x8xf32>,
    %cst_14 = arith.constant dense<0xFF800000> : vector<8xf32>
    %18 = vector.multi_reduction <maximumf>, %14, %cst_14 [1] : vector<8x8xf32> to vector<8xf32>
    %19 = vector.shape_cast %18 : vector<8xf32> to vector<8x1xf32>
    %20 = vector.broadcast %19 : vector<8x1xf32> to vector<8x8xf32>
    %21 = arith.subf %14, %20 : vector<8x8xf32>
    %22 = math.exp %21 : vector<8x8xf32>
    %cst_15 = arith.constant dense<0.000000e+00> : vector<8xf32>
    %23 = vector.multi_reduction <add>, %22, %cst_15 [1] : vector<8x8xf32> to vector<8xf32>
    %24 = vector.shape_cast %23 : vector<8xf32> to vector<8x1xf32>
    %25 = tpu.reciprocal %24 : vector<8x1xf32> -> vector<8x1xf32>
    %26 = vector.broadcast %25 : vector<8x1xf32> to vector<8x8xf32>
    %27 = arith.mulf %22, %26 : vector<8x8xf32>
    %c0_16 = arith.constant 0 : index
    %c0_17 = arith.constant 0 : index
    %c0_18 = arith.constant 0 : index
    %c0_19 = arith.constant 0 : index
    %28 = vector.load %arg8[%c0_16, %c0_17, %c0_18, %c0_19] : memref<1x1x8x8xf32, #tpu.memory_space<vmem>>, vector<1x1x8x8xf32>
    %29 = vector.shape_cast %28 : vector<1x1x8x8xf32> to vector<8x8xf32>
    %30 = vector.shape_cast %27 : vector<8x8xf32> to vector<1x1x8x8xf32>
    tpu.vector_store %arg8[%c0_16, %c0_17, %c0_18, %c0_19], %30 {strides = array<i32>} : memref<1x1x8x8xf32, #tpu.memory_space<vmem>>, vector<1x1x8x8xf32>,
    %c0_20 = arith.constant 0 : index
    %c0_21 = arith.constant 0 : index
    %c0_22 = arith.constant 0 : index
    %c0_23 = arith.constant 0 : index
    %31 = vector.load %arg5[%c0_20, %c0_21, %c0_22, %c0_23] : memref<1x1x8x32xf32, #tpu.memory_space<vmem>>, vector<1x1x8x32xf32>
    %32 = vector.shape_cast %31 : vector<1x1x8x32xf32> to vector<8x32xf32>
    "tpu.trace_start"() <{level = 10 : i32, message = "ij,jd->id"}> : () -> ()
    %cst_24 = arith.constant dense<0.000000e+00> : vector<8x32xf32>
    %33 = tpu.matmul %27, %32, %cst_24 {dimension_numbers = #tpu.dot_dimension_numbers<[1], [0], [0], [1], [0, 0, 1, 1], [], []>} : vector<8x8xf32>, vector<8x32xf32>, vector<8x32xf32> -> vector<8x32xf32>
    %c3_i32 = arith.constant 3 : i32
    "tpu.trace_stop"() : () -> ()
    %34 = arith.cmpi slt, %arg1, %c3_i32 : i32
    %35 = arith.extui %34 : i1 to i32
    %c0_i32_25 = arith.constant 0 : i32
    %36 = arith.cmpi ne, %35, %c0_i32_25 : i32
    scf.if %36 {
      %40 = arith.index_cast %1 : i32 to index
      %c0_30 = arith.constant 0 : index
      %41 = vector.load %arg9[%40, %c0_30] : memref<8x32xf32, #tpu.memory_space<vmem>>, vector<8x32xf32>
      tpu.vector_store %arg9[%40, %c0_30], %33 {strides = array<i32>} : memref<8x32xf32, #tpu.memory_space<vmem>>, vector<8x32xf32>,
    } else {
    }
    %c0_26 = arith.constant 0 : index
    %c0_27 = arith.constant 0 : index
    %c0_28 = arith.constant 0 : index
    %c0_29 = arith.constant 0 : index
    %37 = vector.load %arg6[%c0_26, %c0_27, %c0_28, %c0_29] : memref<1x1x8x32xf32, #tpu.memory_space<vmem>>, vector<1x1x8x32xf32>
    %38 = vector.shape_cast %37 : vector<1x1x8x32xf32> to vector<8x32xf32>
    %39 = vector.shape_cast %33 : vector<8x32xf32> to vector<1x1x8x32xf32>
    tpu.vector_store %arg6[%c0_26, %c0_27, %c0_28, %c0_29], %39 {strides = array<i32>} : memref<1x1x8x32xf32, #tpu.memory_space<vmem>>, vector<1x1x8x32xf32>,
    return
  }
  func.func @transform_0(%arg0: i32, %arg1: i32, %arg2: i32) -> (i32, i32, i32, i32) {
    %c0_i32 = arith.constant 0 : i32
    %c0_i32_0 = arith.constant 0 : i32
    return %arg0, %arg1, %arg2, %c0_i32 : i32, i32, i32, i32
  }
  func.func @transform_1(%arg0: i32, %arg1: i32, %arg2: i32) -> (i32, i32, i32, i32) {
    %c0_i32 = arith.constant 0 : i32
    %c0_i32_0 = arith.constant 0 : i32
    %c0_i32_1 = arith.constant 0 : i32
    return %arg0, %arg1, %c0_i32, %c0_i32_0 : i32, i32, i32, i32
  }
  func.func @transform_2(%arg0: i32, %arg1: i32, %arg2: i32) -> (i32, i32, i32, i32) {
    %c0_i32 = arith.constant 0 : i32
    %c0_i32_0 = arith.constant 0 : i32
    %c0_i32_1 = arith.constant 0 : i32
    return %arg0, %arg1, %c0_i32, %c0_i32_0 : i32, i32, i32, i32
  }
  func.func @transform_3(%arg0: i32, %arg1: i32, %arg2: i32) -> (i32, i32, i32, i32) {
    %c0_i32 = arith.constant 0 : i32
    %c0_i32_0 = arith.constant 0 : i32
    return %arg0, %arg1, %arg2, %c0_i32 : i32, i32, i32, i32
  }
  func.func @transform_4(%arg0: i32, %arg1: i32, %arg2: i32) -> (i32, i32, i32, i32) {
    %c0_i32 = arith.constant 0 : i32
    %c0_i32_0 = arith.constant 0 : i32
    return %arg0, %arg1, %arg2, %c0_i32 : i32, i32, i32, i32
  }
  func.func @transform_5(%arg0: i32, %arg1: i32, %arg2: i32) -> (i32, i32, i32, i32) {
    %c0_i32 = arith.constant 0 : i32
    %c0_i32_0 = arith.constant 0 : i32
    return %arg0, %arg1, %arg2, %c0_i32 : i32, i32, i32, i32
  }
}

</mosaic_0001>

<llo_original>
// kernel: tpu_custom_call.1
$region0: #{tpu_custom_call.1}
  #allocation0 [shape = 'u32[]', space=smem, size = 0x4, offset = 0x4, fixed_abs, tag = 'smem constant byte address 0x4 - core index']
  #allocation1 [shape = 'u32[144,128]{1,0:T(1,128)}', space=vmem, size = 0x12000, scoped, tag = 'internal scratch']
  #allocation2 [shape = 'f32[8,32]{1,0:T(8,128)}', space=vmem, size = 0x1000, scoped, tag = 'scratch operand']
  %s0 = inlined_call_operand.hbm [shape: f32[2,4,8,32], index: 0, kind: input, shape index: {}]
  %s1 = inlined_call_operand.hbm [shape: f32[2,4,8,32], index: 1, kind: input, shape index: {}]
  %s2 = inlined_call_operand.hbm [shape: f32[2,4,8,32], index: 2, kind: input, shape index: {}]
  %s3 = inlined_call_operand.hbm [shape: f32[2,4,8,32], index: 3, kind: output, shape index: {0}]
  %s4 = inlined_call_operand.hbm [shape: f32[2,4,8,8], index: 4, kind: output, shape index: {1}]
  %s5 = inlined_call_operand.hbm [shape: f32[2,4,8,8], index: 5, kind: output, shape index: {2}]
  %6 = xla_tuple %s3, %s4, %s5
  %s7 = sld [smem:[#allocation0]]
  $region81: #{tpu_custom_call.1} parent=0
    _
  %s9 = ssub.s32 1, %s7
  %s10 = scalar_select 0, %s9, %s7
  $region1: #{tpu_custom_call.1} parent=0
    #allocation3 [shape = 'u8[8192]{0}', space=vmem, size = 0x2000, scoped, tag = 'input window, operand 0']
    #allocation4 [shape = 's32[2]{0}', space=sflag, size = 0x8, scoped, tag = 'scoped memory for tpu_custom_call.1']
    #allocation5 [shape = 's32[2]{0}', space=sflag, size = 0x8, scoped, tag = 'scoped memory for tpu_custom_call.1']
    #allocation6 [shape = 'u8[8192]{0}', space=vmem, size = 0x2000, scoped, tag = 'input window, operand 1']
    #allocation7 [shape = 's32[2]{0}', space=sflag, size = 0x8, scoped, tag = 'scoped memory for tpu_custom_call.1']
    #allocation8 [shape = 'u8[8192]{0}', space=vmem, size = 0x2000, scoped, tag = 'input window, operand 2']
    #allocation9 [shape = 'u8[8192]{0}', space=vmem, size = 0x2000, scoped, tag = 'output window, operand 0']
    #allocation10 [shape = 'u8[8192]{0}', space=vmem, size = 0x2000, scoped, tag = 'output window, operand 1']
    #allocation11 [shape = 's32[2]{0}', space=sflag, size = 0x8, scoped, tag = 'scoped memory for tpu_custom_call.1']
    #allocation12 [shape = 'u8[8192]{0}', space=vmem, size = 0x2000, scoped, tag = 'output window, operand 2']
    %11 = vsyncpa [#allocation4], 0
    %s12 = scalar_lea.sflag [#allocation4], 1
    %13 = vsyncpa %s12, 0
    %14 = vsyncpa [#allocation7], 0
    %s15 = scalar_lea.sflag [#allocation7], 1
    %16 = vsyncpa %s15, 0
    %17 = vsyncpa [#allocation5], 0
    %s18 = scalar_lea.sflag [#allocation5], 1
    %19 = vsyncpa %s18, 0
    %20 = vsyncpa [#allocation11], 0
    %s21 = scalar_lea.sflag [#allocation11], 1
    %22 = vsyncpa %s21, 0
    loop: start=0, step=1, limit=10
    $region2: #{tpu_custom_call.1} parent=1 // loop_pre_header
      _
    $region3: #{tpu_custom_call.1} parent=1 // loop_header
      %s24 = sphi 0, %s28
      %p25 = scmp.ge.s32.totalorder %s24, 10
      %s31 = sphi 0, %s50
      %s32 = sphi 0, %s46
      %s33 = sphi 0, %s42
      %s34 = sphi 0, %s31
      %s35 = sphi 0, %s32
      %s36 = sphi 0, %s33
      %s37 = sphi 0, %s34
      %s38 = sphi 0, %s35
      %s39 = sphi 0, %s36
      %s57 = sphi 0, %s59
      %s60 = sphi 0, %s57
      %s61 = sphi 0, %s60
      %s77 = sphi 0, %s61
      %s85 = sphi 0, %s87
      %s88 = sphi 0, %s85
      %s89 = sphi 0, %s88
      %s105 = sphi 0, %s89
      %s113 = sphi 0, %s115
      %s116 = sphi 0, %s113
      %s117 = sphi 0, %s116
      %s133 = sphi 0, %s117
      %s143 = sphi 0, %s145
      %s146 = sphi 0, %s143
      %s147 = sphi 0, %s146
      %s163 = sphi 0, %s147
      %s173 = sphi 0, %s175
      %s176 = sphi 0, %s173
      %s177 = sphi 0, %s176
      %s193 = sphi 0, %s177
      %s203 = sphi 0, %s205
      %s206 = sphi 0, %s203
      %s207 = sphi 0, %s206
      %s223 = sphi 0, %s207
    $region4: #{tpu_custom_call.1} parent=1 // loop_header_branch
      %27 = sbr.rel (%p25) target = $region8
    $region5: #{tpu_custom_call.1} parent=1 // loop_body
      %s29 = ssub.s32 %s24, 1
      %s30 = ssub.s32 %s24, 2
      %s40 = sadd.s32 1, %s33
      %p41 = scmp.ge.s32.totalorder %s40, 1
      %s42 = scalar_select %p41, 0, %s40
      %s43 = sadd.s32 1, %s32
      %s44 = scalar_select %p41, %s43, %s32
      %p45 = scmp.ge.s32.totalorder %s44, 4
      %s46 = scalar_select %p45, 0, %s44
      %s47 = sadd.s32 1, %s31
      %s48 = scalar_select %p45, %s47, %s31
      %p49 = scmp.ge.s32.totalorder %s48, 2
      %s50 = scalar_select %p49, 0, %s48
      %s51 = ssub.s32 %s31, %s50
      %s52 = ssub.s32 %s32, %s46
      %s53 = sor.u32 %s51, %s52
      %s54 = ssub.s32 %s33, %s42
      %s55 = sor.u32 %s53, %s54
      %p56 = scmp.eq.s32.totalorder %s55, 0
      %s58 = sadd.s32 %s57, 1
      %s59 = scalar_select %p56, %s57, %s58
      %p62 = pneg %p56
      %p63 = scmp.eq.s32.totalorder %s24, 7
      %p64 = por %p62, %p63
      %p65 = scmp.ne.s32.totalorder %s57, %s60
      %p66 = scmp.eq.s32.totalorder %s24, 0
      %p67 = por %p65, %p66
      %p68 = scmp.ne.s32.totalorder %s57, %s60
      %p69 = scmp.eq.s32.totalorder %s29, 7
      %p70 = por %p68, %p69
      %p71 = scmp.ne.s32.totalorder %s60, %s61
      %p72 = scmp.eq.s32.totalorder %s29, 0
      %p73 = por %p71, %p72
      %p74 = scmp.ne.s32.totalorder %s60, %s61
      %p75 = scmp.eq.s32.totalorder %s30, 7
      %p76 = por %p74, %p75
      %p78 = scmp.ne.s32.totalorder %s61, %s77
      %p79 = scmp.eq.s32.totalorder %s30, 0
      %p80 = por %p78, %p79
      %s81 = ssub.s32 %s31, %s50
      %s82 = ssub.s32 %s32, %s46
      %s83 = sor.u32 %s81, %s82
      %p84 = scmp.eq.s32.totalorder %s83, 0
      %s86 = sadd.s32 %s85, 1
      %s87 = scalar_select %p84, %s85, %s86
      %p90 = pneg %p84
      %p91 = scmp.eq.s32.totalorder %s24, 7
      %p92 = por %p90, %p91
      %p93 = scmp.ne.s32.totalorder %s85, %s88
      %p94 = scmp.eq.s32.totalorder %s24, 0
      %p95 = por %p93, %p94
      %p96 = scmp.ne.s32.totalorder %s85, %s88
      %p97 = scmp.eq.s32.totalorder %s29, 7
      %p98 = por %p96, %p97
      %p99 = scmp.ne.s32.totalorder %s88, %s89
      %p100 = scmp.eq.s32.totalorder %s29, 0
      %p101 = por %p99, %p100
      %p102 = scmp.ne.s32.totalorder %s88, %s89
      %p103 = scmp.eq.s32.totalorder %s30, 7
      %p104 = por %p102, %p103
      %p106 = scmp.ne.s32.totalorder %s89, %s105
      %p107 = scmp.eq.s32.totalorder %s30, 0
      %p108 = por %p106, %p107
      %s109 = ssub.s32 %s31, %s50
      %s110 = ssub.s32 %s32, %s46
      %s111 = sor.u32 %s109, %s110
      %p112 = scmp.eq.s32.totalorder %s111, 0
      %s114 = sadd.s32 %s113, 1
      %s115 = scalar_select %p112, %s113, %s114
      %p118 = pneg %p112
      %p119 = scmp.eq.s32.totalorder %s24, 7
      %p120 = por %p118, %p119
      %p121 = scmp.ne.s32.totalorder %s113, %s116
      %p122 = scmp.eq.s32.totalorder %s24, 0
      %p123 = por %p121, %p122
      %p124 = scmp.ne.s32.totalorder %s113, %s116
      %p125 = scmp.eq.s32.totalorder %s29, 7
      %p126 = por %p124, %p125
      %p127 = scmp.ne.s32.totalorder %s116, %s117
      %p128 = scmp.eq.s32.totalorder %s29, 0
      %p129 = por %p127, %p128
      %p130 = scmp.ne.s32.totalorder %s116, %s117
      %p131 = scmp.eq.s32.totalorder %s30, 7
      %p132 = por %p130, %p131
      %p134 = scmp.ne.s32.totalorder %s117, %s133
      %p135 = scmp.eq.s32.totalorder %s30, 0
      %p136 = por %p134, %p135
      %s137 = ssub.s32 %s31, %s50
      %s138 = ssub.s32 %s32, %s46
      %s139 = sor.u32 %s137, %s138
      %s140 = ssub.s32 %s33, %s42
      %s141 = sor.u32 %s139, %s140
      %p142 = scmp.eq.s32.totalorder %s141, 0
      %s144 = sadd.s32 %s143, 1
      %s145 = scalar_select %p142, %s143, %s144
      %p148 = pneg %p142
      %p149 = scmp.eq.s32.totalorder %s24, 7
      %p150 = por %p148, %p149
      %p151 = scmp.ne.s32.totalorder %s143, %s146
      %p152 = scmp.eq.s32.totalorder %s24, 0
      %p153 = por %p151, %p152
      %p154 = scmp.ne.s32.totalorder %s143, %s146
      %p155 = scmp.eq.s32.totalorder %s29, 7
      %p156 = por %p154, %p155
      %p157 = scmp.ne.s32.totalorder %s146, %s147
      %p158 = scmp.eq.s32.totalorder %s29, 0
      %p159 = por %p157, %p158
      %p160 = scmp.ne.s32.totalorder %s146, %s147
      %p161 = scmp.eq.s32.totalorder %s30, 7
      %p162 = por %p160, %p161
      %p164 = scmp.ne.s32.totalorder %s147, %s163
      %p165 = scmp.eq.s32.totalorder %s30, 0
      %p166 = por %p164, %p165
      %s167 = ssub.s32 %s31, %s50
      %s168 = ssub.s32 %s32, %s46
      %s169 = sor.u32 %s167, %s168
      %s170 = ssub.s32 %s33, %s42
      %s171 = sor.u32 %s169, %s170
      %p172 = scmp.eq.s32.totalorder %s171, 0
      %s174 = sadd.s32 %s173, 1
      %s175 = scalar_select %p172, %s173, %s174
      %p178 = pneg %p172
      %p179 = scmp.eq.s32.totalorder %s24, 7
      %p180 = por %p178, %p179
      %p181 = scmp.ne.s32.totalorder %s173, %s176
      %p182 = scmp.eq.s32.totalorder %s24, 0
      %p183 = por %p181, %p182
      %p184 = scmp.ne.s32.totalorder %s173, %s176
      %p185 = scmp.eq.s32.totalorder %s29, 7
      %p186 = por %p184, %p185
      %p187 = scmp.ne.s32.totalorder %s176, %s177
      %p188 = scmp.eq.s32.totalorder %s29, 0
      %p189 = por %p187, %p188
      %p190 = scmp.ne.s32.totalorder %s176, %s177
      %p191 = scmp.eq.s32.totalorder %s30, 7
      %p192 = por %p190, %p191
      %p194 = scmp.ne.s32.totalorder %s177, %s193
      %p195 = scmp.eq.s32.totalorder %s30, 0
      %p196 = por %p194, %p195
      %s197 = ssub.s32 %s31, %s50
      %s198 = ssub.s32 %s32, %s46
      %s199 = sor.u32 %s197, %s198
      %s200 = ssub.s32 %s33, %s42
      %s201 = sor.u32 %s199, %s200
      %p202 = scmp.eq.s32.totalorder %s201, 0
      %s204 = sadd.s32 %s203, 1
      %s205 = scalar_select %p202, %s203, %s204
      %p208 = pneg %p202
      %p209 = scmp.eq.s32.totalorder %s24, 7
      %p210 = por %p208, %p209
      %p211 = scmp.ne.s32.totalorder %s203, %s206
      %p212 = scmp.eq.s32.totalorder %s24, 0
      %p213 = por %p211, %p212
      %p214 = scmp.ne.s32.totalorder %s203, %s206
      %p215 = scmp.eq.s32.totalorder %s29, 7
      %p216 = por %p214, %p215
      %p217 = scmp.ne.s32.totalorder %s206, %s207
      %p218 = scmp.eq.s32.totalorder %s29, 0
      %p219 = por %p217, %p218
      %p220 = scmp.ne.s32.totalorder %s206, %s207
      %p221 = scmp.eq.s32.totalorder %s30, 7
      %p222 = por %p220, %p221
      %p224 = scmp.ne.s32.totalorder %s207, %s223
      %p225 = scmp.eq.s32.totalorder %s30, 0
      %p226 = por %p224, %p225
      %p227 = scmp.le.s32.totalorder 1, %s24
      %p228 = scmp.lt.s32.totalorder %s24, 9
      %p229 = pnand %p227, %p228
      %p230 = pneg %p229
      // Predicated region
      $region9: #{tpu_custom_call.1} parent=5 // pred_check
        _
      $region10: #{tpu_custom_call.1} parent=5 // pred_check_branch
        %232 = sbr.rel (%p229) target = $region12
      $region11: #{tpu_custom_call.1} parent=5 // pred_region
        %s233 = ssub.s32 %s24, 1
      $region12: #{tpu_custom_call.1} parent=5 // pred_fallthru
        _
      %p234 = scmp.lt.s32.totalorder %s24, 8
      // Predicated region
      $region13: #{tpu_custom_call.1} parent=5 // pred_check
        %p235 = pneg %p234
      $region14: #{tpu_custom_call.1} parent=5 // pred_check_branch
        %237 = sbr.rel (%p235) target = $region16
      $region15: #{tpu_custom_call.1} parent=5 // pred_region
        // Predicated region
        $region17: #{tpu_custom_call.1} parent=15 // pred_check
          %p238 = pneg %p67
        $region18: #{tpu_custom_call.1} parent=15 // pred_check_branch
          %240 = sbr.rel (%p238) target = $region20
        $region19: #{tpu_custom_call.1} parent=15 // pred_region
          %s241 = sand.u32 %s57, 1
          %s242 = scalar_lea.sflag [#allocation4], %s241
          %s243 = sand.u32 %s57, 1
          %s244 = smul.addr %s243, 8
          %s245 = scalar_lea.vmem [#allocation3], %s244
          %s247 = ssub.s32 128, 128
          %248 = vsyncadd %s242, %s247
          %s249 = sadd.s32 %s33, %s32
          %s250 = smul.addr %s31, 4
          %s251 = sadd.s32 %s249, %s250
          %s252 = smul.addr %s251, 128
          %s253 = scalar_lea.hbm %s0, %s252
          %s255 = sshll.u32 %s245, 4
          %s256 = int_to_ptr.vmem [resolvable:$true] %s255
          %258 = dma.hbm_to_vmem [thread:$0]  %s253, 128, %s256, %s242
        $region20: #{tpu_custom_call.1} parent=15 // pred_fallthru
          _
        // Predicated region
        $region21: #{tpu_custom_call.1} parent=15 // pred_check
          %p259 = pneg %p95
        $region22: #{tpu_custom_call.1} parent=15 // pred_check_branch
          %261 = sbr.rel (%p259) target = $region24
        $region23: #{tpu_custom_call.1} parent=15 // pred_region
          %s262 = sand.u32 %s24, 1
          %s263 = scalar_lea.sflag [#allocation7], %s262
          %s264 = sand.u32 %s85, 1
          %s265 = smul.addr %s264, 8
          %s266 = scalar_lea.vmem [#allocation6], %s265
          %s268 = ssub.s32 128, 128
          %269 = vsyncadd %s263, %s268
          %s270 = smul.addr %s31, 4
          %s271 = sadd.s32 %s32, %s270
          %s272 = smul.addr %s271, 128
          %s273 = scalar_lea.hbm %s1, %s272
          %s275 = sshll.u32 %s266, 4
          %s276 = int_to_ptr.vmem [resolvable:$true] %s275
          %278 = dma.hbm_to_vmem [thread:$0]  %s273, 128, %s276, %s263
        $region24: #{tpu_custom_call.1} parent=15 // pred_fallthru
          _
        // Predicated region
        $region25: #{tpu_custom_call.1} parent=15 // pred_check
          %p279 = pneg %p123
        $region26: #{tpu_custom_call.1} parent=15 // pred_check_branch
          %281 = sbr.rel (%p279) target = $region28
        $region27: #{tpu_custom_call.1} parent=15 // pred_region
          %s282 = sand.u32 %s24, 1
          %s283 = scalar_lea.sflag [#allocation7], %s282
          %s284 = sand.u32 %s113, 1
          %s285 = smul.addr %s284, 8
          %s286 = scalar_lea.vmem [#allocation8], %s285
          %s288 = ssub.s32 128, 128
          %289 = vsyncadd %s283, %s288
          %s290 = smul.addr %s31, 4
          %s291 = sadd.s32 %s32, %s290
          %s292 = smul.addr %s291, 128
          %s293 = scalar_lea.hbm %s2, %s292
          %s295 = sshll.u32 %s286, 4
          %s296 = int_to_ptr.vmem [resolvable:$true] %s295
          %298 = dma.hbm_to_vmem [thread:$0]  %s293, 128, %s296, %s283
        $region28: #{tpu_custom_call.1} parent=15 // pred_fallthru
          _
      $region16: #{tpu_custom_call.1} parent=5 // pred_fallthru
        _
      %p299 = scmp.le.s32.totalorder 1, %s24
      %p300 = scmp.lt.s32.totalorder %s24, 9
      %p301 = pnand %p299, %p300
      %p302 = pneg %p301
      // Predicated region
      $region29: #{tpu_custom_call.1} parent=5 // pred_check
        _
      $region30: #{tpu_custom_call.1} parent=5 // pred_check_branch
        %304 = sbr.rel (%p301) target = $region32
      $region31: #{tpu_custom_call.1} parent=5 // pred_region
        %s305 = ssub.s32 %s24, 1
        %s306 = sand.u32 %s60, 1
        %s307 = scalar_lea.sflag [#allocation4], %s306
        %s308 = sand.u32 %s60, 1
        %s309 = smul.addr %s308, 8
        %s310 = scalar_lea.vmem [#allocation3], %s309
        // Predicated region
        $region33: #{tpu_custom_call.1} parent=31 // pred_check
          %p311 = pneg %p73
        $region34: #{tpu_custom_call.1} parent=31 // pred_check_branch
          %313 = sbr.rel (%p311) target = $region36
        $region35: #{tpu_custom_call.1} parent=31 // pred_region
          %314 = dma.done %s307, 128
        $region36: #{tpu_custom_call.1} parent=31 // pred_fallthru
          _
        %s315 = sand.u32 %s29, 1
        %s316 = scalar_lea.sflag [#allocation7], %s315
        %s317 = sand.u32 %s88, 1
        %s318 = smul.addr %s317, 8
        %s319 = scalar_lea.vmem [#allocation6], %s318
        // Predicated region
        $region37: #{tpu_custom_call.1} parent=31 // pred_check
          %p320 = pneg %p101
        $region38: #{tpu_custom_call.1} parent=31 // pred_check_branch
          %322 = sbr.rel (%p320) target = $region40
        $region39: #{tpu_custom_call.1} parent=31 // pred_region
          %323 = dma.done %s316, 128
        $region40: #{tpu_custom_call.1} parent=31 // pred_fallthru
          _
        %s324 = sand.u32 %s29, 1
        %s325 = scalar_lea.sflag [#allocation7], %s324
        %s326 = sand.u32 %s116, 1
        %s327 = smul.addr %s326, 8
        %s328 = scalar_lea.vmem [#allocation8], %s327
        // Predicated region
        $region41: #{tpu_custom_call.1} parent=31 // pred_check
          %p329 = pneg %p129
        $region42: #{tpu_custom_call.1} parent=31 // pred_check_branch
          %331 = sbr.rel (%p329) target = $region44
        $region43: #{tpu_custom_call.1} parent=31 // pred_region
          %332 = dma.done %s325, 128
        $region44: #{tpu_custom_call.1} parent=31 // pred_fallthru
          _
        %s333 = sand.u32 %s60, 1
        %s334 = scalar_lea.sflag [#allocation4], %s333
        %s335 = sand.u32 %s60, 1
        %s336 = smul.addr %s335, 8
        %s337 = scalar_lea.vmem [#allocation3], %s336
        %p338 = pneg %p73
        %p339 = pneg %p70
        %s340 = sand.u32 %s29, 1
        %s341 = scalar_lea.sflag [#allocation7], %s340
        %s342 = sand.u32 %s88, 1
        %s343 = smul.addr %s342, 8
        %s344 = scalar_lea.vmem [#allocation6], %s343
        %p345 = pneg %p101
        %p346 = pneg %p98
        %s347 = sand.u32 %s29, 1
        %s348 = scalar_lea.sflag [#allocation7], %s347
        %s349 = sand.u32 %s116, 1
        %s350 = smul.addr %s349, 8
        %s351 = scalar_lea.vmem [#allocation8], %s350
        %p352 = pneg %p129
        %p353 = pneg %p126
        %p354 = pneg %p159
        %p355 = pneg %p156
        %s356 = sand.u32 %s146, 1
        %s357 = scalar_lea.sflag [#allocation5], %s356
        %s358 = sand.u32 %s146, 1
        %s359 = smul.addr %s358, 8
        %s360 = scalar_lea.vmem [#allocation9], %s359
        %p361 = pneg %p189
        %p362 = pneg %p186
        %s363 = sand.u32 %s29, 1
        %s364 = scalar_lea.sflag [#allocation11], %s363
        %s365 = sand.u32 %s176, 1
        %s366 = smul.addr %s365, 8
        %s367 = scalar_lea.vmem [#allocation10], %s366
        %p368 = pneg %p219
        %p369 = pneg %p216
        %s370 = sand.u32 %s29, 1
        %s371 = scalar_lea.sflag [#allocation11], %s370
        %s372 = sand.u32 %s206, 1
        %s373 = smul.addr %s372, 8
        %s374 = scalar_lea.vmem [#allocation12], %s373
        %s375 = smul.u32 %s36, 8
        %p376 = scmp.eq.s32.totalorder %s35, 0
        // Predicated region
        $region45: #{tpu_custom_call.1} parent=31 // pred_check
          %p377 = pneg %p376
        $region46: #{tpu_custom_call.1} parent=31 // pred_check_branch
          %379 = sbr.rel (%p377) target = $region48
        $region47: #{tpu_custom_call.1} parent=31 // pred_region
          %s380 = scalar_lea.vmem [#allocation2], %s375
          %vm381 = vcmask 261120
          %382 = vst.msk [vmem:[%s380] sm:$0xff] %vm381, 0.0
        $region48: #{tpu_custom_call.1} parent=31 // pred_fallthru
          _
        %v383 = vld [vmem:[%s310] sm:$0xff]
        %s384 = scalar_lea.vmem [#allocation2], %s375
        %v385 = vld [vmem:[%s384] sm:$0xff]
        %v386 = vadd.f32 %v383, %v385
        %v387 = vmul.f32 %v386, 0.17677669
        %v388 = vld [vmem:[%s319] sm:$0xff]
        %vm389 = vcmask 261120
        %v391 = vsel %vm389, %v387, 0
        %v394 = vsel %vm389, %v388, 0
        %396 = vmatprep.subr.mxu0 0.0
        %397 = vmatpush1.xpose.msra.mxu0 %v394
        %398 = vmatprep.subr.mxu0 0.0
        %399 = vmatpush1.xpose.msra.mxu0 0.0
        %400 = vmatprep.subr.mxu0 0.0
        %401 = vmatpush1.xpose.msra.mxu0 0.0
        %402 = vmatprep.subr.mxu0 0.0
        %403 = vmatpush1.xpose.msra.mxu0 0.0
        %404 = vmatprep.subr.mxu0 0.0
        %405 = vmatpush1.xpose.msra.mxu0 0.0
        %406 = vmatprep.subr.mxu0 0.0
        %407 = vmatpush1.xpose.msra.mxu0 0.0
        %408 = vmatprep.subr.mxu0 0.0
        %409 = vmatpush1.xpose.msra.mxu0 0.0
        %410 = vmatprep.subr.mxu0 0.0
        %411 = vmatpush1.xpose.msra.mxu0 0.0
        %412 = vmatprep.subr.mxu0 0.0
        %413 = vmatpush1.xpose.msra.mxu0 0.0
        %414 = vmatprep.subr.mxu0 0.0
        %415 = vmatpush1.xpose.msra.mxu0 0.0
        %416 = vmatprep.subr.mxu0 0.0
        %417 = vmatpush1.xpose.msra.mxu0 0.0
        %418 = vmatprep.subr.mxu0 0.0
        %419 = vmatpush1.xpose.msra.mxu0 0.0
        %420 = vmatprep.subr.mxu0 0.0
        %421 = vmatpush1.xpose.msra.mxu0 0.0
        %422 = vmatprep.subr.mxu0 0.0
        %423 = vmatpush1.xpose.msra.mxu0 0.0
        %424 = vmatprep.subr.mxu0 0.0
        %425 = vmatpush1.xpose.msra.mxu0 0.0
        %426 = vmatprep.subr.mxu0 0.0
        %427 = vmatpush1.xpose.msra.mxu0 0.0
        %428 = vmatprep.subr.mxu0 0.0
        %429 = vmatpush1.xpose.msra.mxu0 0.0
        %430 = vmatprep.subr.mxu0 0.0
        %431 = vmatpush1.xpose.msra.mxu0 0.0
        %432 = vmatprep.subr.mxu0 0.0
        %433 = vmatpush1.xpose.msra.mxu0 0.0
        %434 = vmatprep.subr.mxu0 0.0
        %435 = vmatpush1.xpose.msra.mxu0 0.0
        %436 = vmatprep.subr.mxu0 0.0
        %437 = vmatpush1.xpose.msra.mxu0 0.0
        %438 = vmatprep.subr.mxu0 0.0
        %439 = vmatpush1.xpose.msra.mxu0 0.0
        %440 = vmatprep.subr.mxu0 0.0
        %441 = vmatpush1.xpose.msra.mxu0 0.0
        %442 = vmatprep.subr.mxu0 0.0
        %443 = vmatpush1.xpose.msra.mxu0 0.0
        %444 = vmatprep.subr.mxu0 0.0
        %445 = vmatpush1.xpose.msra.mxu0 0.0
        %446 = vmatprep.subr.mxu0 0.0
        %447 = vmatpush1.xpose.msra.mxu0 0.0
        %448 = vmatprep.subr.mxu0 0.0
        %449 = vmatpush1.xpose.msra.mxu0 0.0
        %450 = vmatprep.subr.mxu0 0.0
        %451 = vmatpush1.xpose.msra.mxu0 0.0
        %452 = vmatprep.subr.mxu0 0.0
        %453 = vmatpush1.xpose.msra.mxu0 0.0
        %454 = vmatprep.subr.mxu0 0.0
        %455 = vmatpush1.xpose.msra.mxu0 0.0
        %456 = vmatprep.subr.mxu0 0.0
        %457 = vmatpush1.xpose.msra.mxu0 0.0
        %458 = vmatprep.subr.mxu0 0.0
        %459 = vmatpush1.xpose.msra.mxu0 0.0
        %460 = vmatprep.mubr.f32.mxu0 0.0
        %461 = vmatmul.mubr.f32.gmra.mrb[0].mxu0 %v391
        %v462 = vpop.f32.mrb[0].mxu0
        %v463 = vadd.f32 0.0, %v462
        %v464 = vpop.f32.mrb[0].mxu0
        %465 = vdwg.mxu0
        %vm466 = vcmask 64512
        %467 = vst.msk [vmem:[%s367] sm:$0xff] %vm466, %v463
        %v468 = vsel %vm466, %v463, -inf
        %469 = vmax.xlane.f32.xlu0 %v468
        %v470 = vpop.xlane.xlu0 %469
        %v471 = vsub.f32 %v463, %v470
        %v472 = vmul.f32 %v471, 1.442695
        %v473 = vpow.pop %v472
        %v474 = vsel %vm466, %v473, 0.0
        %475 = vadd.xlane.f32.xlu0 %v474
        %v476 = vpop.xlane.xlu0 %475
        %v477 = vrcp.pop %v476
        %v478 = vmul.f32 %v473, %v477
        %479 = vst.msk [vmem:[%s374] sm:$0xff] %vm466, %v478
        %v480 = vld [vmem:[%s328] sm:$0xff]
        %v482 = vsel %vm466, %v478, 0
        %484 = vmatprep.subr.mxu0 0.0
        %485 = vmatpush1.msra.mxu0 %v480
        %486 = vmatprep.subr.mxu0 0.0
        %487 = vmatpush1.msra.mxu0 0.0
        %488 = vmatprep.subr.mxu0 0.0
        %489 = vmatpush1.msra.mxu0 0.0
        %490 = vmatprep.subr.mxu0 0.0
        %491 = vmatpush1.msra.mxu0 0.0
        %492 = vmatprep.subr.mxu0 0.0
        %493 = vmatpush1.msra.mxu0 0.0
        %494 = vmatprep.subr.mxu0 0.0
        %495 = vmatpush1.msra.mxu0 0.0
        %496 = vmatprep.subr.mxu0 0.0
        %497 = vmatpush1.msra.mxu0 0.0
        %498 = vmatprep.subr.mxu0 0.0
        %499 = vmatpush1.msra.mxu0 0.0
        %500 = vmatprep.subr.mxu0 0.0
        %501 = vmatpush1.msra.mxu0 0.0
        %502 = vmatprep.subr.mxu0 0.0
        %503 = vmatpush1.msra.mxu0 0.0
        %504 = vmatprep.subr.mxu0 0.0
        %505 = vmatpush1.msra.mxu0 0.0
        %506 = vmatprep.subr.mxu0 0.0
        %507 = vmatpush1.msra.mxu0 0.0
        %508 = vmatprep.subr.mxu0 0.0
        %509 = vmatpush1.msra.mxu0 0.0
        %510 = vmatprep.subr.mxu0 0.0
        %511 = vmatpush1.msra.mxu0 0.0
        %512 = vmatprep.subr.mxu0 0.0
        %513 = vmatpush1.msra.mxu0 0.0
        %514 = vmatprep.subr.mxu0 0.0
        %515 = vmatpush1.msra.mxu0 0.0
        %516 = vmatprep.subr.mxu0 0.0
        %517 = vmatpush1.msra.mxu0 0.0
        %518 = vmatprep.subr.mxu0 0.0
        %519 = vmatpush1.msra.mxu0 0.0
        %520 = vmatprep.subr.mxu0 0.0
        %521 = vmatpush1.msra.mxu0 0.0
        %522 = vmatprep.subr.mxu0 0.0
        %523 = vmatpush1.msra.mxu0 0.0
        %524 = vmatprep.subr.mxu0 0.0
        %525 = vmatpush1.msra.mxu0 0.0
        %526 = vmatprep.subr.mxu0 0.0
        %527 = vmatpush1.msra.mxu0 0.0
        %528 = vmatprep.subr.mxu0 0.0
        %529 = vmatpush1.msra.mxu0 0.0
        %530 = vmatprep.subr.mxu0 0.0
        %531 = vmatpush1.msra.mxu0 0.0
        %532 = vmatprep.subr.mxu0 0.0
        %533 = vmatpush1.msra.mxu0 0.0
        %534 = vmatprep.subr.mxu0 0.0
        %535 = vmatpush1.msra.mxu0 0.0
        %536 = vmatprep.subr.mxu0 0.0
        %537 = vmatpush1.msra.mxu0 0.0
        %538 = vmatprep.subr.mxu0 0.0
        %539 = vmatpush1.msra.mxu0 0.0
        %540 = vmatprep.subr.mxu0 0.0
        %541 = vmatpush1.msra.mxu0 0.0
        %542 = vmatprep.subr.mxu0 0.0
        %543 = vmatpush1.msra.mxu0 0.0
        %544 = vmatprep.subr.mxu0 0.0
        %545 = vmatpush1.msra.mxu0 0.0
        %546 = vmatprep.subr.mxu0 0.0
        %547 = vmatpush1.msra.mxu0 0.0
        %548 = vmatprep.mubr.f32.mxu0 0.0
        %549 = vmatmul.mubr.f32.gmra.mrb[0].mxu0 %v482
        %v550 = vpop.f32.mrb[0].mxu0
        %v551 = vadd.f32 0.0, %v550
        %v552 = vpop.f32.mrb[0].mxu0
        %553 = vdwg.mxu0
        %p554 = scmp.lt.s32.totalorder %s35, 3
        // Predicated region
        $region49: #{tpu_custom_call.1} parent=31 // pred_check
          %p555 = pneg %p554
        $region50: #{tpu_custom_call.1} parent=31 // pred_check_branch
          %557 = sbr.rel (%p555) target = $region52
        $region51: #{tpu_custom_call.1} parent=31 // pred_region
          %558 = vst.msk [vmem:[%s384] sm:$0xff] %vm389, %v551
        $region52: #{tpu_custom_call.1} parent=31 // pred_fallthru
          _
        %559 = vst.msk [vmem:[%s360] sm:$0xff] %vm389, %v551
        %s560 = sand.u32 %s146, 1
        %s561 = scalar_lea.sflag [#allocation5], %s560
        %s562 = sand.u32 %s146, 1
        %s563 = smul.addr %s562, 8
        %s564 = scalar_lea.vmem [#allocation9], %s563
        %s565 = sand.u32 %s29, 1
        %s566 = scalar_lea.sflag [#allocation11], %s565
        %s567 = sand.u32 %s176, 1
        %s568 = smul.addr %s567, 8
        %s569 = scalar_lea.vmem [#allocation10], %s568
        %s570 = sand.u32 %s29, 1
        %s571 = scalar_lea.sflag [#allocation11], %s570
        %s572 = sand.u32 %s206, 1
        %s573 = smul.addr %s572, 8
        %s574 = scalar_lea.vmem [#allocation12], %s573
        // Predicated region
        $region53: #{tpu_custom_call.1} parent=31 // pred_check
          %p575 = pneg %p156
        $region54: #{tpu_custom_call.1} parent=31 // pred_check_branch
          %577 = sbr.rel (%p575) target = $region56
        $region55: #{tpu_custom_call.1} parent=31 // pred_region
          %s579 = ssub.s32 128, 128
          %580 = vsyncadd %s561, %s579
          %s581 = sadd.s32 %s36, %s35
          %s582 = smul.addr %s34, 4
          %s583 = sadd.s32 %s581, %s582
          %s584 = smul.addr %s583, 128
          %s585 = scalar_lea.hbm %s3, %s584
          %s587 = sshll.u32 %s564, 4
          %s588 = int_to_ptr.vmem [resolvable:$true] %s587
          %590 = dma.vmem_to_hbm [thread:$0]  %s588, 128, %s585, %s561
        $region56: #{tpu_custom_call.1} parent=31 // pred_fallthru
          _
        // Predicated region
        $region57: #{tpu_custom_call.1} parent=31 // pred_check
          %p591 = pneg %p186
        $region58: #{tpu_custom_call.1} parent=31 // pred_check_branch
          %593 = sbr.rel (%p591) target = $region60
        $region59: #{tpu_custom_call.1} parent=31 // pred_region
          %s595 = ssub.s32 128, 128
          %596 = vsyncadd %s566, %s595
          %s597 = sadd.s32 %s36, %s35
          %s598 = smul.addr %s34, 4
          %s599 = sadd.s32 %s597, %s598
          %s600 = smul.addr %s599, 128
          %s601 = scalar_lea.hbm %s4, %s600
          %s603 = sshll.u32 %s569, 4
          %s604 = int_to_ptr.vmem [resolvable:$true] %s603
          %606 = dma.vmem_to_hbm [thread:$0]  %s604, 128, %s601, %s566
        $region60: #{tpu_custom_call.1} parent=31 // pred_fallthru
          _
        // Predicated region
        $region61: #{tpu_custom_call.1} parent=31 // pred_check
          %p607 = pneg %p216
        $region62: #{tpu_custom_call.1} parent=31 // pred_check_branch
          %609 = sbr.rel (%p607) target = $region64
        $region63: #{tpu_custom_call.1} parent=31 // pred_region
          %s611 = ssub.s32 128, 128
          %612 = vsyncadd %s571, %s611
          %s613 = sadd.s32 %s36, %s35
          %s614 = smul.addr %s34, 4
          %s615 = sadd.s32 %s613, %s614
          %s616 = smul.addr %s615, 128
          %s617 = scalar_lea.hbm %s5, %s616
          %s619 = sshll.u32 %s574, 4
          %s620 = int_to_ptr.vmem [resolvable:$true] %s619
          %622 = dma.vmem_to_hbm [thread:$0]  %s620, 128, %s617, %s571
        $region64: #{tpu_custom_call.1} parent=31 // pred_fallthru
          _
      $region32: #{tpu_custom_call.1} parent=5 // pred_fallthru
        _
      %p623 = scmp.le.s32.totalorder 2, %s24
      // Predicated region
      $region65: #{tpu_custom_call.1} parent=5 // pred_check
        %p624 = pneg %p623
      $region66: #{tpu_custom_call.1} parent=5 // pred_check_branch
        %626 = sbr.rel (%p624) target = $region68
      $region67: #{tpu_custom_call.1} parent=5 // pred_region
        %s627 = ssub.s32 %s24, 2
        // Predicated region
        $region69: #{tpu_custom_call.1} parent=67 // pred_check
          %p628 = pneg %p162
        $region70: #{tpu_custom_call.1} parent=67 // pred_check_branch
          %630 = sbr.rel (%p628) target = $region72
        $region71: #{tpu_custom_call.1} parent=67 // pred_region
          %s631 = sand.u32 %s147, 1
          %s632 = scalar_lea.sflag [#allocation5], %s631
          %s633 = sand.u32 %s147, 1
          %s634 = smul.addr %s633, 8
          %s635 = scalar_lea.vmem [#allocation9], %s634
          %636 = dma.done %s632, 128
        $region72: #{tpu_custom_call.1} parent=67 // pred_fallthru
          _
        // Predicated region
        $region73: #{tpu_custom_call.1} parent=67 // pred_check
          %p637 = pneg %p192
        $region74: #{tpu_custom_call.1} parent=67 // pred_check_branch
          %639 = sbr.rel (%p637) target = $region76
        $region75: #{tpu_custom_call.1} parent=67 // pred_region
          %s640 = sand.u32 %s30, 1
          %s641 = scalar_lea.sflag [#allocation11], %s640
          %s642 = sand.u32 %s177, 1
          %s643 = smul.addr %s642, 8
          %s644 = scalar_lea.vmem [#allocation10], %s643
          %645 = dma.done %s641, 128
        $region76: #{tpu_custom_call.1} parent=67 // pred_fallthru
          _
        // Predicated region
        $region77: #{tpu_custom_call.1} parent=67 // pred_check
          %p646 = pneg %p222
        $region78: #{tpu_custom_call.1} parent=67 // pred_check_branch
          %648 = sbr.rel (%p646) target = $region80
        $region79: #{tpu_custom_call.1} parent=67 // pred_region
          %s649 = sand.u32 %s30, 1
          %s650 = scalar_lea.sflag [#allocation11], %s649
          %s651 = sand.u32 %s207, 1
          %s652 = smul.addr %s651, 8
          %s653 = scalar_lea.vmem [#allocation12], %s652
          %654 = dma.done %s650, 128
        $region80: #{tpu_custom_call.1} parent=67 // pred_fallthru
          _
      $region68: #{tpu_custom_call.1} parent=5 // pred_fallthru
        _
    $region6: #{tpu_custom_call.1} parent=1 // loop_footer
      %s28 = sadd.s32 1, %s24
    $region7: #{tpu_custom_call.1} parent=1 // loop_footer_branch
      %23 = sbr.rel target = $region3
    $region8: #{tpu_custom_call.1} parent=1 // loop_exit
      _
    %655 = vsyncpa [#allocation4], 1
    %s656 = scalar_lea.sflag [#allocation4], 1
    %657 = vsyncpa %s656, 1
    %658 = vsyncpa [#allocation7], 1
    %s659 = scalar_lea.sflag [#allocation7], 1
    %660 = vsyncpa %s659, 1
    %661 = vsyncpa [#allocation5], 1
    %s662 = scalar_lea.sflag [#allocation5], 1
    %663 = vsyncpa %s662, 1
    %664 = vsyncpa [#allocation11], 1
    %s665 = scalar_lea.sflag [#allocation11], 1
    %666 = vsyncpa %s665, 1

</llo_original>
